<compile_context>
chip_gen: v6e
topology: v6e:2x2x1
jax: 0.10.0
libtpu: 0.0.40
codegen_flags: <defaults>
</compile_context>

<pallas_src>
import jax
import jax.numpy as jnp
import numpy as np
from jax.experimental import pallas as pl
from jax.experimental.pallas import tpu as pltpu


def _make_kernel(widths, L, Co_pad, w_max):
    """Build the fused conv+bias+ReLU+maxpool kernel (all config static)."""

    def kernel(x_ref, w_ref, b_ref, o_ref):
        # x_ref: (TB*L, D)            f32  -- this step's rows (TB whole batches)
        # w_ref: (w_max*D, n_w*Co_pad) bf16 -- taps flattened into K, widths into N
        # b_ref: (1, n_w*Co_pad)       f32
        # o_ref: (TB, n_w*Co_pad)      f32  -- lane-dense output slab
        BLt, _ = x_ref.shape
        TB = o_ref.shape[0]

        x = x_ref[...]                                          # (BLt, D) f32

        # In-kernel im2col: tap k sits at K-offset k*D.  Rolling the narrow
        # f32 input keeps XLU traffic tiny; wraparound rows only ever land on
        # positions that are masked below.
        taps = [x]
        for k in range(1, w_max):
            taps.append(pltpu.roll(x, shift=BLt - k, axis=0))   # row t <- x[t + k]
        xim = jnp.concatenate(taps, axis=1).astype(jnp.bfloat16)  # (BLt, w_max*D)

        # One MXU dot covering every width at once: K = w_max*D, N = n_w*Co_pad,
        # f32 accumulation.  Zero-padded taps of the narrower widths are part
        # of K (full systolic depth, no per-tap VPU adds).
        acc = jnp.dot(xim, w_ref[...], preferred_element_type=jnp.float32)
        acc = jnp.maximum(acc + b_ref[...], 0.0)                # bias + ReLU (f32)

        # Hoisted row-position index, reused by every width's validity mask.
        pos = jax.lax.broadcasted_iota(jnp.int32, (BLt, 1), 0) % L

        for i, w in enumerate(widths):
            lout = L - w + 1                                    # static valid length
            slab = acc[:, i * Co_pad:(i + 1) * Co_pad]          # 128-aligned slice
            # Rows past lout (incl. roll wraparound / batch-boundary leakage)
            # are invalid.  ReLU output >= 0, so masking with 0 is exact for
            # the max; if the activation ever changes, mask with -inf instead.
            slab = jnp.where(pos < lout, slab, 0.0)
            o_ref[:, i * Co_pad:(i + 1) * Co_pad] = jnp.max(
                slab.reshape(TB, L, Co_pad), axis=1)            # max_pool1d over seq

    return kernel


def cnn_text_forward(x, weights, biases, widths, *, batch_tile=None):
    """Fused Pallas implementation of CNN_Text.forward.

    x: (B, L, D) f32; weights[i]: (w_i, D, Co) f32 (PyTorch Conv2d weight
    (Co, 1, w, D) transposed); biases[i]: (1, Co) f32.
    Returns (B, len(widths) * Co), matching torch.cat([...], dim=1).
    """
    B, L, D = x.shape
    n_w = len(widths)
    Co = weights[0].shape[-1]
    Co_pad = pl.cdiv(Co, 128) * 128
    w_max = max(widths)
    N_out = n_w * Co_pad

    if L < w_max:
        raise ValueError(f"sequence length {L} is shorter than widest filter {w_max}")

    # One grid step covers `batch_tile` whole batch rows so the max-pool never
    # crosses a tile.  Default: whole batch in a single step (right for toy
    # sizes -- no pipeline-step overhead).  For production B*L, pick a
    # batch_tile (multiple of 8) that fits VMEM -- halve it on v7x (64 MiB),
    # consider pipeline_mode=pl.Buffered(1) on the constant weight/bias specs
    # and raising vmem_limit_bytes -- and use an even step count for v7x's
    # two TensorCores.
    if batch_tile is None:
        batch_tile = B
    if B % batch_tile != 0 or not (batch_tile == B or batch_tile % 8 == 0):
        raise ValueError("batch_tile must divide B and be B or a multiple of 8")

    # Weights: (w_i, D, Co) -> zero-pad taps to w_max and Co to Co_pad, flatten
    # taps into K, fold widths into N -> (w_max*D, n_w*Co_pad); bf16 for MXU.
    w_cols = []
    for W in weights:
        w_i = W.shape[0]
        Wp = jnp.pad(W, ((0, w_max - w_i), (0, 0), (0, Co_pad - Co)))
        w_cols.append(Wp.reshape(w_max * D, Co_pad))
    W_all = jnp.concatenate(w_cols, axis=1).astype(jnp.bfloat16)     # (w_max*D, N_out)

    b_all = jnp.concatenate(
        [jnp.pad(b.reshape(1, Co), ((0, 0), (0, Co_pad - Co))) for b in biases],
        axis=1).astype(jnp.float32)                                  # (1, N_out)

    x2 = x.reshape(B * L, D).astype(jnp.float32)                     # (B*L, D)

    kernel = _make_kernel(tuple(widths), L, Co_pad, w_max)

    out_pad = pl.pallas_call(
        kernel,
        out_shape=jax.ShapeDtypeStruct((B, N_out), jnp.float32),
        grid=(B // batch_tile,),
        in_specs=[
            pl.BlockSpec((batch_tile * L, D), lambda bt: (bt, 0)),   # row tile
            pl.BlockSpec((w_max * D, N_out), lambda bt: (0, 0)),     # constant block
            pl.BlockSpec((1, N_out), lambda bt: (0, 0)),             # constant block
        ],
        out_specs=pl.BlockSpec((batch_tile, N_out), lambda bt: (bt, 0)),
        compiler_params=pltpu.CompilerParams(
            dimension_semantics=("parallel",)),
    )(x2, W_all, b_all)

    # Drop the Co padding; column order matches torch.cat over widths.
    return out_pad.reshape(B, n_w, Co_pad)[:, :, :Co].reshape(B, n_w * Co)


def _reference_forward(x, weights, biases):
    """Pure-JAX f32 reference replicating the PyTorch semantics."""
    outs = []
    for W, b in zip(weights, biases):                         # W: (w, D, Co), b: (1, Co)
        w, _, Co = W.shape
        L = x.shape[1]
        Lout = L - w + 1
        wins = jnp.stack([x[:, t:t + w, :] for t in range(Lout)], axis=1)  # (B,Lout,w,D)
        s = jnp.einsum("blwd,wdc->blc", wins, W) + b[None, :, :]
        s = jnp.maximum(s, 0.0)
        outs.append(jnp.max(s, axis=1))                                    # (B, Co)
    return jnp.concatenate(outs, axis=1)


if __name__ == "__main__":
    # Config consistent with the module: embedding dim 32, seq len 16,
    # batch 2, widths [3, 4, 5], filters 100 -> output (2, 300).
    B, L, D = 2, 16, 32
    widths = [3, 4, 5]
    Co = 100

    key = jax.random.PRNGKey(0)
    kx, *kws = jax.random.split(key, 1 + 2 * len(widths))
    x = jax.random.normal(kx, (B, L, D), dtype=jnp.float32)

    weights, biases = [], []
    for i, w in enumerate(widths):
        kw_w, kw_b = kws[2 * i], kws[2 * i + 1]
        # PyTorch Conv2d weight is (Co, 1, w, D); store transposed as (w, D, Co).
        W_torch = 0.1 * jax.random.normal(kw_w, (Co, 1, w, D), dtype=jnp.float32)
        weights.append(jnp.transpose(W_torch[:, 0], (1, 2, 0)))
        biases.append(0.1 * jax.random.normal(kw_b, (1, Co), dtype=jnp.float32))

    out = cnn_text_forward(x, weights, biases, widths)
    out = jax.block_until_ready(out)

    ref = _reference_forward(x, weights, biases)
    assert out.shape == (B, Co * len(widths))
    # bf16 MXU inputs (f32 accumulation) -> loosened tolerance vs f32 reference.
    np.testing.assert_allclose(np.asarray(out), np.asarray(ref), rtol=5e-2, atol=5e-2)

    print("KERNEL_OK")
</pallas_src>

<mosaic_0001>
module attributes {stable_mosaic.version = 11 : i64} {
  func.func @kernel(%arg0: i32, %arg1: memref<32x32xf32, #tpu.memory_space<vmem>>, %arg2: memref<160x384xbf16, #tpu.memory_space<vmem>>, %arg3: memref<1x384xf32, #tpu.memory_space<vmem>>, %arg4: memref<2x384xf32, #tpu.memory_space<vmem>>) attributes {dimension_semantics = [#tpu.dimension_semantics<parallel>], iteration_bounds = array<i64: 1>, scalar_prefetch = 0 : i64, scratch_operands = 0 : i64, tpu.core_type = #tpu.core_type<tc>, window_params = [{transform_indices = @transform_0, window_bounds = array<i64: 32, 32>}, {pipeline_mode = #tpu.pipeline_mode<synchronous>, transform_indices = @transform_1, window_bounds = array<i64: 160, 384>}, {pipeline_mode = #tpu.pipeline_mode<synchronous>, transform_indices = @transform_2, window_bounds = array<i64: 1, 384>}, {transform_indices = @transform_3, window_bounds = array<i64: 2, 384>}]} {
    %c0 = arith.constant 0 : index
    %c0_0 = arith.constant 0 : index
    %0 = vector.load %arg1[%c0, %c0_0] : memref<32x32xf32, #tpu.memory_space<vmem>>, vector<32x32xf32>
    %c31_i32 = arith.constant 31 : i32
    %1 = tpu.dynamic_rotate %0 by %c31_i32 dim 0 : vector<32x32xf32>, i32 -> vector<32x32xf32>
    %c30_i32 = arith.constant 30 : i32
    %2 = tpu.dynamic_rotate %0 by %c30_i32 dim 0 : vector<32x32xf32>, i32 -> vector<32x32xf32>
    %c29_i32 = arith.constant 29 : i32
    %3 = tpu.dynamic_rotate %0 by %c29_i32 dim 0 : vector<32x32xf32>, i32 -> vector<32x32xf32>
    %c28_i32 = arith.constant 28 : i32
    %4 = tpu.dynamic_rotate %0 by %c28_i32 dim 0 : vector<32x32xf32>, i32 -> vector<32x32xf32>
    %5 = tpu.concatenate %0, %1, %2, %3, %4 in 1 : vector<32x32xf32>, vector<32x32xf32>, vector<32x32xf32>, vector<32x32xf32>, vector<32x32xf32> -> vector<32x160xf32>
    %6 = arith.truncf %5 : vector<32x160xf32> to vector<32x160xbf16>
    %c0_1 = arith.constant 0 : index
    %c0_2 = arith.constant 0 : index
    %7 = vector.load %arg2[%c0_1, %c0_2] : memref<160x384xbf16, #tpu.memory_space<vmem>>, vector<160x384xbf16>
    %cst = arith.constant dense<0.000000e+00> : vector<32x384xf32>
    %8 = tpu.matmul %6, %7, %cst {dimension_numbers = #tpu.dot_dimension_numbers<[1], [0], [0], [1], [0, 0, 1, 1], [], []>} : vector<32x160xbf16>, vector<160x384xbf16>, vector<32x384xf32> -> vector<32x384xf32>
    %c0_3 = arith.constant 0 : index
    %c0_4 = arith.constant 0 : index
    %9 = vector.load %arg3[%c0_3, %c0_4] : memref<1x384xf32, #tpu.memory_space<vmem>>, vector<1x384xf32>
    %10 = vector.broadcast %9 : vector<1x384xf32> to vector<32x384xf32>
    %11 = arith.addf %8, %10 : vector<32x384xf32>
    %cst_5 = arith.constant 0.000000e+00 : f32
    %12 = vector.broadcast %cst_5 : f32 to vector<32x384xf32>
    %13 = arith.maximumf %11, %12 : vector<32x384xf32>
    %14 = tpu.iota {dimensions = array<i32: 0>} : vector<32x1xi32>
    %c16_i32 = arith.constant 16 : i32
    %c0_i32 = arith.constant 0 : i32
    %15 = arith.cmpi eq, %c16_i32, %c0_i32 : i32
    %c1_i32 = arith.constant 1 : i32
    %16 = arith.select %15, %c1_i32, %c16_i32 : i32
    %17 = vector.broadcast %16 : i32 to vector<32x1xi32>
    %18 = arith.remsi %14, %17 : vector<32x1xi32>
    %c0_i32_6 = arith.constant 0 : i32
    %19 = vector.broadcast %c0_i32_6 : i32 to vector<32x1xi32>
    %20 = arith.cmpi ne, %18, %19 : vector<32x1xi32>
    %c0_i32_7 = arith.constant 0 : i32
    %21 = vector.broadcast %c0_i32_7 : i32 to vector<32x1xi32>
    %22 = arith.cmpi slt, %18, %21 : vector<32x1xi32>
    %c0_i32_8 = arith.constant 0 : i32
    %23 = arith.cmpi slt, %16, %c0_i32_8 : i32
    %24 = vector.broadcast %23 : i1 to vector<32x1xi1>
    %25 = vector.broadcast %24 : vector<32x1xi1> to vector<32x1xi1>
    %26 = arith.xori %22, %25 : vector<32x1xi1>
    %27 = arith.andi %26, %20 : vector<32x1xi1>
    %28 = vector.broadcast %16 : i32 to vector<32x1xi32>
    %29 = arith.addi %18, %28 : vector<32x1xi32>
    %30 = arith.select %27, %29, %18 : vector<32x1xi1>, vector<32x1xi32>
    %31 = vector.extract_strided_slice %13 {offsets = [0, 0], sizes = [32, 128], strides = [1, 1]} : vector<32x384xf32> to vector<32x128xf32>
    %c14_i32 = arith.constant 14 : i32
    %32 = vector.broadcast %c14_i32 : i32 to vector<32x1xi32>
    %33 = arith.cmpi slt, %30, %32 : vector<32x1xi32>
    %cst_9 = arith.constant 0.000000e+00 : f32
    %34 = vector.shape_cast %33 : vector<32x1xi1> to vector<32x1xi1>
    %35 = vector.broadcast %34 : vector<32x1xi1> to vector<32x128xi1>
    %36 = vector.broadcast %cst_9 : f32 to vector<32x128xf32>
    %37 = arith.select %35, %31, %36 : vector<32x128xi1>, vector<32x128xf32>
    %38 = vector.shape_cast %37 : vector<32x128xf32> to vector<2x16x128xf32>
    %cst_10 = arith.constant dense<0xFF800000> : vector<2x128xf32>
    %39 = vector.multi_reduction <maximumf>, %38, %cst_10 [1] : vector<2x16x128xf32> to vector<2x128xf32>
    %c0_11 = arith.constant 0 : index
    %c0_12 = arith.constant 0 : index
    %40 = vector.load %arg4[%c0_11, %c0_12] : memref<2x384xf32, #tpu.memory_space<vmem>>, vector<2x128xf32>
    tpu.vector_store %arg4[%c0_11, %c0_12], %39 {strides = array<i32>} : memref<2x384xf32, #tpu.memory_space<vmem>>, vector<2x128xf32>,
    %41 = vector.extract_strided_slice %13 {offsets = [0, 128], sizes = [32, 128], strides = [1, 1]} : vector<32x384xf32> to vector<32x128xf32>
    %c13_i32 = arith.constant 13 : i32
    %42 = vector.broadcast %c13_i32 : i32 to vector<32x1xi32>
    %43 = arith.cmpi slt, %30, %42 : vector<32x1xi32>
    %cst_13 = arith.constant 0.000000e+00 : f32
    %44 = vector.shape_cast %43 : vector<32x1xi1> to vector<32x1xi1>
    %45 = vector.broadcast %44 : vector<32x1xi1> to vector<32x128xi1>
    %46 = vector.broadcast %cst_13 : f32 to vector<32x128xf32>
    %47 = arith.select %45, %41, %46 : vector<32x128xi1>, vector<32x128xf32>
    %48 = vector.shape_cast %47 : vector<32x128xf32> to vector<2x16x128xf32>
    %cst_14 = arith.constant dense<0xFF800000> : vector<2x128xf32>
    %49 = vector.multi_reduction <maximumf>, %48, %cst_14 [1] : vector<2x16x128xf32> to vector<2x128xf32>
    %c0_15 = arith.constant 0 : index
    %c128 = arith.constant 128 : index
    %50 = vector.load %arg4[%c0_15, %c128] : memref<2x384xf32, #tpu.memory_space<vmem>>, vector<2x128xf32>
    tpu.vector_store %arg4[%c0_15, %c128], %49 {strides = array<i32>} : memref<2x384xf32, #tpu.memory_space<vmem>>, vector<2x128xf32>,
    %51 = vector.extract_strided_slice %13 {offsets = [0, 256], sizes = [32, 128], strides = [1, 1]} : vector<32x384xf32> to vector<32x128xf32>
    %c12_i32 = arith.constant 12 : i32
    %52 = vector.broadcast %c12_i32 : i32 to vector<32x1xi32>
    %53 = arith.cmpi slt, %30, %52 : vector<32x1xi32>
    %cst_16 = arith.constant 0.000000e+00 : f32
    %54 = vector.shape_cast %53 : vector<32x1xi1> to vector<32x1xi1>
    %55 = vector.broadcast %54 : vector<32x1xi1> to vector<32x128xi1>
    %56 = vector.broadcast %cst_16 : f32 to vector<32x128xf32>
    %57 = arith.select %55, %51, %56 : vector<32x128xi1>, vector<32x128xf32>
    %58 = vector.shape_cast %57 : vector<32x128xf32> to vector<2x16x128xf32>
    %cst_17 = arith.constant dense<0xFF800000> : vector<2x128xf32>
    %59 = vector.multi_reduction <maximumf>, %58, %cst_17 [1] : vector<2x16x128xf32> to vector<2x128xf32>
    %c0_18 = arith.constant 0 : index
    %c256 = arith.constant 256 : index
    %60 = vector.load %arg4[%c0_18, %c256] : memref<2x384xf32, #tpu.memory_space<vmem>>, vector<2x128xf32>
    tpu.vector_store %arg4[%c0_18, %c256], %59 {strides = array<i32>} : memref<2x384xf32, #tpu.memory_space<vmem>>, vector<2x128xf32>,
    return
  }
  func.func @transform_0(%arg0: i32) -> (i32, i32) {
    %c0_i32 = arith.constant 0 : i32
    %c0_i32_0 = arith.constant 0 : i32
    return %arg0, %c0_i32 : i32, i32
  }
  func.func @transform_1(%arg0: i32) -> (i32, i32) {
    %c0_i32 = arith.constant 0 : i32
    %c0_i32_0 = arith.constant 0 : i32
    %c0_i32_1 = arith.constant 0 : i32
    return %c0_i32, %c0_i32_0 : i32, i32
  }
  func.func @transform_2(%arg0: i32) -> (i32, i32) {
    %c0_i32 = arith.constant 0 : i32
    %c0_i32_0 = arith.constant 0 : i32
    %c0_i32_1 = arith.constant 0 : i32
    return %c0_i32, %c0_i32_0 : i32, i32
  }
  func.func @transform_3(%arg0: i32) -> (i32, i32) {
    %c0_i32 = arith.constant 0 : i32
    %c0_i32_0 = arith.constant 0 : i32
    return %arg0, %c0_i32 : i32, i32
  }
}

</mosaic_0001>

<llo_original>
// kernel: tpu_custom_call.1
$region0: #{tpu_custom_call.1}
  #allocation0 [shape = 'u32[]', space=smem, size = 0x4, offset = 0x4, fixed_abs, tag = 'smem constant byte address 0x4 - core index']
  #allocation1 [shape = 'u32[144,128]{1,0:T(1,128)}', space=vmem, size = 0x12000, scoped, tag = 'internal scratch']
  %s0 = inlined_call_operand.hbm [shape: f32[32,32], index: 0, kind: input, shape index: {}]
  %s1 = inlined_call_operand.hbm [shape: bf16[160,384], index: 1, kind: input, shape index: {}]
  %s2 = inlined_call_operand.vmem [shape: f32[1,384], index: 2, kind: input, shape index: {}]
  %s3 = inlined_call_operand.hbm [shape: f32[2,384], index: 3, kind: output, shape index: {}]
  %s4 = sld [smem:[#allocation0]]
  $region30: #{tpu_custom_call.1} parent=0
    _
  %s6 = ssub.s32 1, %s4
  %s7 = scalar_select 0, %s6, %s4
  $region1: #{tpu_custom_call.1} parent=0
    #allocation2 [shape = 'u8[16384]{0}', space=vmem, size = 0x4000, scoped, tag = 'input window, operand 0, single buffered']
    #allocation3 [shape = 's32[1]{0}', space=sflag, size = 0x4, scoped, tag = 'scoped memory for tpu_custom_call.1']
    #allocation4 [shape = 's32[1]{0}', space=sflag, size = 0x4, scoped, tag = 'scoped memory for tpu_custom_call.1']
    #allocation5 [shape = 'u8[122880]{0}', space=vmem, size = 0x1e000, scoped, tag = 'input window, operand 1, single buffered']
    #allocation6 [shape = 's32[1]{0}', space=sflag, size = 0x4, scoped, tag = 'scoped memory for tpu_custom_call.1']
    #allocation7 [shape = 'u8[3072]{0}', space=vmem, size = 0xc00, scoped, tag = 'output window, operand 0, single buffered']
    %8 = vsyncpa [#allocation3], 0
    %9 = vsyncpa [#allocation6], 0
    %10 = vsyncpa [#allocation4], 0
    // Predicated region
    $region2: #{tpu_custom_call.1} parent=1 // pred_check
      _
    $region3: #{tpu_custom_call.1} parent=1 // pred_check_branch
      %12 = sbr.rel (0) target = $region5
    $region4: #{tpu_custom_call.1} parent=1 // pred_region
      %s14 = ssub.s32 512, 512
      %15 = vsyncadd [#allocation3], %s14
      %s16 = sshll.u32 [#allocation2], 4
      %s17 = int_to_ptr.vmem [resolvable:$true] %s16
      %22 = dma.hbm_to_vmem [thread:$0]  %s0, 512, %s17, [#allocation3], 128, 128, 8
    $region5: #{tpu_custom_call.1} parent=1 // pred_fallthru
      _
    // Predicated region
    $region6: #{tpu_custom_call.1} parent=1 // pred_check
      _
    $region7: #{tpu_custom_call.1} parent=1 // pred_check_branch
      %24 = sbr.rel (0) target = $region9
    $region8: #{tpu_custom_call.1} parent=1 // pred_region
      %s26 = ssub.s32 3840, 3840
      %27 = vsyncadd [#allocation6], %s26
      %s28 = sshll.u32 [#allocation5], 4
      %s29 = int_to_ptr.vmem [resolvable:$true] %s28
      %34 = dma.hbm_to_vmem [thread:$0]  %s1, 3840, %s29, [#allocation6], 192, 192, 12
    $region9: #{tpu_custom_call.1} parent=1 // pred_fallthru
      _
    // Predicated region
    $region10: #{tpu_custom_call.1} parent=1 // pred_check
      _
    $region11: #{tpu_custom_call.1} parent=1 // pred_check_branch
      %36 = sbr.rel (0) target = $region13
    $region12: #{tpu_custom_call.1} parent=1 // pred_region
      _
    $region13: #{tpu_custom_call.1} parent=1 // pred_fallthru
      _
    // Predicated region
    $region14: #{tpu_custom_call.1} parent=1 // pred_check
      _
    $region15: #{tpu_custom_call.1} parent=1 // pred_check_branch
      %38 = sbr.rel (0) target = $region17
    $region16: #{tpu_custom_call.1} parent=1 // pred_region
      %39 = dma.done [#allocation3], 512
    $region17: #{tpu_custom_call.1} parent=1 // pred_fallthru
      _
    // Predicated region
    $region18: #{tpu_custom_call.1} parent=1 // pred_check
      _
    $region19: #{tpu_custom_call.1} parent=1 // pred_check_branch
      %41 = sbr.rel (0) target = $region21
    $region20: #{tpu_custom_call.1} parent=1 // pred_region
      %42 = dma.done [#allocation6], 3840
    $region21: #{tpu_custom_call.1} parent=1 // pred_fallthru
      _
    %v44 = vld [vmem:[#allocation2] sm:$0xff]
    %v45 = vld [vmem:[#allocation2 + $0x8] sm:$0xff]
    %v46 = vld [vmem:[#allocation2 + $0x10] sm:$0xff]
    %v47 = vld [vmem:[#allocation2 + $0x18] sm:$0xff]
    %v48 = vrot.slane %v44, 1
    %v49 = vrot.slane %v45, 1
    %v50 = vrot.slane %v46, 1
    %v51 = vrot.slane %v47, 1
    %v52 = vlaneseq
    %v53 = vshrl.u32 %v52, 7
    %vm54 = vcmp.lt.s32.totalorder %v53, 7
    %v55 = vsel %vm54, %v50, %v51
    %v56 = vsel %vm54, %v49, %v50
    %v57 = vsel %vm54, %v48, %v49
    %v58 = vsel %vm54, %v51, %v48
    %v59 = vrot.slane %v44, 2
    %v60 = vrot.slane %v45, 2
    %v61 = vrot.slane %v46, 2
    %v62 = vrot.slane %v47, 2
    %vm63 = vcmp.lt.s32.totalorder %v53, 6
    %v64 = vsel %vm63, %v61, %v62
    %v65 = vsel %vm63, %v60, %v61
    %v66 = vsel %vm63, %v59, %v60
    %v67 = vsel %vm63, %v62, %v59
    %v68 = vrot.slane %v44, 3
    %v69 = vrot.slane %v45, 3
    %v70 = vrot.slane %v46, 3
    %v71 = vrot.slane %v47, 3
    %vm72 = vcmp.lt.s32.totalorder %v53, 5
    %v73 = vsel %vm72, %v70, %v71
    %v74 = vsel %vm72, %v69, %v70
    %v75 = vsel %vm72, %v68, %v69
    %v76 = vsel %vm72, %v71, %v68
    %v77 = vrot.slane %v44, 4
    %v78 = vrot.slane %v45, 4
    %v79 = vrot.slane %v46, 4
    %v80 = vrot.slane %v47, 4
    %vm81 = vcmp.lt.s32.totalorder %v53, 4
    %v82 = vsel %vm81, %v79, %v80
    %v83 = vsel %vm81, %v78, %v79
    %v84 = vsel %vm81, %v77, %v78
    %v85 = vsel %vm81, %v80, %v77
    %90 = vrot.lane.b32.xlu0 %v57, 32
    %v91 = vpop.permute.xlu0 %90
    %92 = vrot.lane.b32.xlu0 %v56, 32
    %v93 = vpop.permute.xlu0 %92
    %94 = vrot.lane.b32.xlu0 %v55, 32
    %v95 = vpop.permute.xlu0 %94
    %96 = vrot.lane.b32.xlu0 %v58, 32
    %v97 = vpop.permute.xlu0 %96
    %106 = vrot.lane.b32.xlu0 %v66, 64
    %v107 = vpop.permute.xlu0 %106
    %108 = vrot.lane.b32.xlu0 %v65, 64
    %v109 = vpop.permute.xlu0 %108
    %110 = vrot.lane.b32.xlu0 %v64, 64
    %v111 = vpop.permute.xlu0 %110
    %112 = vrot.lane.b32.xlu0 %v67, 64
    %v113 = vpop.permute.xlu0 %112
    %122 = vrot.lane.b32.xlu0 %v75, 96
    %v123 = vpop.permute.xlu0 %122
    %124 = vrot.lane.b32.xlu0 %v74, 96
    %v125 = vpop.permute.xlu0 %124
    %126 = vrot.lane.b32.xlu0 %v73, 96
    %v127 = vpop.permute.xlu0 %126
    %128 = vrot.lane.b32.xlu0 %v76, 96
    %v129 = vpop.permute.xlu0 %128
    %vm134 = vcmask 261120
    %v135 = vsel %vm134, %v44, %v91
    %v136 = vsel %vm134, %v45, %v93
    %v137 = vsel %vm134, %v46, %v95
    %v138 = vsel %vm134, %v47, %v97
    %vm139 = vcmask 523264
    %v140 = vsel %vm139, %v135, %v107
    %v141 = vsel %vm139, %v136, %v109
    %v142 = vsel %vm139, %v137, %v111
    %v143 = vsel %vm139, %v138, %v113
    %vm144 = vcmask 785408
    %v145 = vsel %vm144, %v140, %v123
    %v146 = vsel %vm144, %v141, %v125
    %v147 = vsel %vm144, %v142, %v127
    %v148 = vsel %vm144, %v143, %v129
    %v149 = vpack.c.bf16 %v146, %v145
    %v150 = vpack.c.bf16 %v83, %v84
    %v151 = vpack.c.bf16 %v148, %v147
    %v152 = vpack.c.bf16 %v85, %v82
    %v153 = vld [vmem:[#allocation5] sm:$0xff]
    %v154 = vld [vmem:[#allocation5 + $0x8] sm:$0xf]
    %v155 = vld [vmem:[#allocation5 + $0xc] sm:$0xff]
    %v156 = vld [vmem:[#allocation5 + $0x14] sm:$0xf]
    %v157 = vld [vmem:[#allocation5 + $0x18] sm:$0xff]
    %v158 = vld [vmem:[#allocation5 + $0x20] sm:$0xf]
    %v159 = vld [vmem:[#allocation5 + $0x24] sm:$0xff]
    %v160 = vld [vmem:[#allocation5 + $0x2c] sm:$0xf]
    %v161 = vld [vmem:[#allocation5 + $0x30] sm:$0xff]
    %v162 = vld [vmem:[#allocation5 + $0x38] sm:$0xf]
    %v163 = vld [vmem:[#allocation5 + $0x3c] sm:$0xff]
    %v164 = vld [vmem:[#allocation5 + $0x44] sm:$0xf]
    %v165 = vld [vmem:[#allocation5 + $0x48] sm:$0xff]
    %v166 = vld [vmem:[#allocation5 + $0x50] sm:$0xf]
    %v167 = vld [vmem:[#allocation5 + $0x54] sm:$0xff]
    %v168 = vld [vmem:[#allocation5 + $0x5c] sm:$0xf]
    %v169 = vld [vmem:[#allocation5 + $0x60] sm:$0xff]
    %v170 = vld [vmem:[#allocation5 + $0x68] sm:$0xf]
    %v171 = vld [vmem:[#allocation5 + $0x6c] sm:$0xff]
    %v172 = vld [vmem:[#allocation5 + $0x74] sm:$0xf]
    %v173 = vld [vmem:[#allocation5 + $0x78] sm:$0xff]
    %v174 = vld [vmem:[#allocation5 + $0x80] sm:$0xf]
    %v175 = vld [vmem:[#allocation5 + $0x84] sm:$0xff]
    %v176 = vld [vmem:[#allocation5 + $0x8c] sm:$0xf]
    %v177 = vld [vmem:[#allocation5 + $0x90] sm:$0xff]
    %v178 = vld [vmem:[#allocation5 + $0x98] sm:$0xf]
    %v179 = vld [vmem:[#allocation5 + $0x9c] sm:$0xff]
    %v180 = vld [vmem:[#allocation5 + $0xa4] sm:$0xf]
    %v181 = vld [vmem:[#allocation5 + $0xa8] sm:$0xff]
    %v182 = vld [vmem:[#allocation5 + $0xb0] sm:$0xf]
    %v183 = vld [vmem:[#allocation5 + $0xb4] sm:$0xff]
    %v184 = vld [vmem:[#allocation5 + $0xbc] sm:$0xf]
    %v185 = vld [vmem:[#allocation5 + $0xc0] sm:$0xff]
    %v186 = vld [vmem:[#allocation5 + $0xc8] sm:$0xf]
    %v187 = vld [vmem:[#allocation5 + $0xcc] sm:$0xff]
    %v188 = vld [vmem:[#allocation5 + $0xd4] sm:$0xf]
    %v189 = vld [vmem:[#allocation5 + $0xd8] sm:$0xff]
    %v190 = vld [vmem:[#allocation5 + $0xe0] sm:$0xf]
    %v191 = vld [vmem:[#allocation5 + $0xe4] sm:$0xff]
    %v192 = vld [vmem:[#allocation5 + $0xec] sm:$0xf]
    %v193 = vld [vmem:[%s2] sm:$0x7]
    %v195 = vlaneseq
    %v196 = vshrl.u32 %v195, 7
    %v197 = vsub.s32 0, %v196
    %v198 = vrot.slane %v193, %v197
    %v199 = vlaneseq
    %v200 = vshrl.u32 %v199, 7
    %v201 = vsub.s32 1, %v200
    %v202 = vrot.slane %v193, %v201
    %v203 = vlaneseq
    %v204 = vshrl.u32 %v203, 7
    %v205 = vsub.s32 2, %v204
    %v206 = vrot.slane %v193, %v205
    %v250 = vunpack.c.l.b16 %v153
    %v251 = vunpack.c.h.b16 %v153
    %v252 = vunpack.c.l.b16 %v154
    %v253 = vunpack.c.l.b16 %v155
    %v254 = vunpack.c.h.b16 %v155
    %v255 = vunpack.c.l.b16 %v156
    %v256 = vunpack.c.l.b16 %v157
    %v257 = vunpack.c.h.b16 %v157
    %v258 = vunpack.c.l.b16 %v158
    %v259 = vunpack.c.l.b16 %v159
    %v260 = vunpack.c.h.b16 %v159
    %v261 = vunpack.c.l.b16 %v160
    %v262 = vunpack.c.l.b16 %v161
    %v263 = vunpack.c.h.b16 %v161
    %v264 = vunpack.c.l.b16 %v162
    %v265 = vunpack.c.l.b16 %v163
    %v266 = vunpack.c.h.b16 %v163
    %v267 = vunpack.c.l.b16 %v164
    %v268 = vunpack.c.l.b16 %v165
    %v269 = vunpack.c.h.b16 %v165
    %v270 = vunpack.c.l.b16 %v166
    %v271 = vunpack.c.l.b16 %v167
    %v272 = vunpack.c.h.b16 %v167
    %v273 = vunpack.c.l.b16 %v168
    %v274 = vunpack.c.l.b16 %v169
    %v275 = vunpack.c.h.b16 %v169
    %v276 = vunpack.c.l.b16 %v170
    %v277 = vunpack.c.l.b16 %v171
    %v278 = vunpack.c.h.b16 %v171
    %v279 = vunpack.c.l.b16 %v172
    %v280 = vunpack.c.l.b16 %v173
    %v281 = vunpack.c.h.b16 %v173
    %v282 = vunpack.c.l.b16 %v174
    %v283 = vunpack.c.l.b16 %v175
    %v284 = vunpack.c.h.b16 %v175
    %v285 = vunpack.c.l.b16 %v176
    %v286 = vunpack.c.l.b16 %v177
    %v287 = vunpack.c.h.b16 %v177
    %v288 = vunpack.c.l.b16 %v178
    %v289 = vunpack.c.l.b16 %v179
    %v290 = vunpack.c.h.b16 %v179
    %v291 = vunpack.c.l.b16 %v180
    %v292 = vunpack.c.l.b16 %v181
    %v293 = vunpack.c.h.b16 %v181
    %v294 = vunpack.c.l.b16 %v182
    %v295 = vunpack.c.l.b16 %v183
    %v296 = vunpack.c.h.b16 %v183
    %v297 = vunpack.c.l.b16 %v184
    %v298 = vunpack.c.l.b16 %v185
    %v299 = vunpack.c.h.b16 %v185
    %v300 = vunpack.c.l.b16 %v186
    %v301 = vunpack.c.l.b16 %v187
    %v302 = vunpack.c.h.b16 %v187
    %v303 = vunpack.c.l.b16 %v188
    %v304 = vunpack.c.l.b16 %v189
    %v305 = vunpack.c.h.b16 %v189
    %v306 = vunpack.c.l.b16 %v190
    %v307 = vunpack.c.l.b16 %v191
    %v308 = vunpack.c.h.b16 %v191
    %v309 = vunpack.c.l.b16 %v192
    %v310 = vpack.c.b16 %v253, %v250
    %v311 = vpack.c.b16 %v254, %v251
    %v312 = vpack.c.b16 %v255, %v252
    %v313 = vpack.c.b16 %v259, %v256
    %v314 = vpack.c.b16 %v260, %v257
    %v315 = vpack.c.b16 %v261, %v258
    %v316 = vpack.c.b16 %v265, %v262
    %v317 = vpack.c.b16 %v266, %v263
    %v318 = vpack.c.b16 %v267, %v264
    %v319 = vpack.c.b16 %v271, %v268
    %v320 = vpack.c.b16 %v272, %v269
    %v321 = vpack.c.b16 %v273, %v270
    %v322 = vpack.c.b16 %v277, %v274
    %v323 = vpack.c.b16 %v278, %v275
    %v324 = vpack.c.b16 %v279, %v276
    %v325 = vpack.c.b16 %v283, %v280
    %v326 = vpack.c.b16 %v284, %v281
    %v327 = vpack.c.b16 %v285, %v282
    %v328 = vpack.c.b16 %v289, %v286
    %v329 = vpack.c.b16 %v290, %v287
    %v330 = vpack.c.b16 %v291, %v288
    %v331 = vpack.c.b16 %v295, %v292
    %v332 = vpack.c.b16 %v296, %v293
    %v333 = vpack.c.b16 %v297, %v294
    %v334 = vpack.c.b16 %v301, %v298
    %v335 = vpack.c.b16 %v302, %v299
    %v336 = vpack.c.b16 %v303, %v300
    %v337 = vpack.c.b16 %v307, %v304
    %v338 = vpack.c.b16 %v308, %v305
    %v339 = vpack.c.b16 %v309, %v306
    %v371 = vsel %vm134, %v150, 0
    %v374 = vsel %vm134, %v152, 0
    %376 = vmatprep.subr.bf16.mxu0 %v332
    %377 = vmatpush1.bf16.msra.mxu0 %v331
    %378 = vmatprep.subr.bf16.mxu0 %v329
    %379 = vmatpush1.bf16.msra.mxu0 %v328
    %380 = vmatprep.subr.bf16.mxu0 %v326
    %381 = vmatpush1.bf16.msra.mxu0 %v325
    %382 = vmatprep.subr.bf16.mxu0 %v323
    %383 = vmatpush1.bf16.msra.mxu0 %v322
    %384 = vmatprep.subr.bf16.mxu0 %v320
    %385 = vmatpush1.bf16.msra.mxu0 %v319
    %386 = vmatprep.subr.bf16.mxu0 %v317
    %387 = vmatpush1.bf16.msra.mxu0 %v316
    %388 = vmatprep.subr.bf16.mxu0 %v314
    %389 = vmatpush1.bf16.msra.mxu0 %v313
    %390 = vmatprep.subr.bf16.mxu0 %v311
    %391 = vmatpush1.bf16.msra.mxu0 %v310
    %392 = vmatprep.subr.bf16.mxu0 0
    %393 = vmatpush2.bf16.msra.mxu0 0
    %394 = vmatprep.subr.bf16.mxu0 0
    %395 = vmatpush2.bf16.msra.mxu0 0
    %396 = vmatprep.subr.bf16.mxu0 0
    %397 = vmatpush2.bf16.msra.mxu0 0
    %398 = vmatprep.subr.bf16.mxu0 0
    %399 = vmatpush2.bf16.msra.mxu0 0
    %400 = vmatprep.subr.bf16.mxu0 0
    %401 = vmatpush2.bf16.msra.mxu0 0
    %402 = vmatprep.subr.bf16.mxu0 0
    %403 = vmatpush2.bf16.msra.mxu0 0
    %404 = vmatprep.subr.bf16.mxu0 %v338
    %405 = vmatpush2.bf16.msra.mxu0 %v337
    %406 = vmatprep.subr.bf16.mxu0 %v335
    %407 = vmatpush2.bf16.msra.mxu0 %v334
    %408 = vmatprep.mubr.bf16.mxu0 %v371
    %409 = vmatmul.mubr.bf16.gmra.mxu0 %v149
    %v410 = vpop.f32.mrf.mxu0
    %v411 = vadd.f32 %v198, %v410
    %v412 = vpop.f32.mrf.mxu0
    %v413 = vadd.f32 %v202, %v412
    %v414 = vpop.f32.mrf.mxu0
    %v415 = vadd.f32 %v198, %v414
    %v416 = vpop.f32.mrf.mxu0
    %v417 = vadd.f32 %v202, %v416
    %418 = vmatprep.mubr.bf16.mxu0 %v374
    %419 = vmatmul.mubr.bf16.gmra.mxu0 %v151
    %v420 = vpop.f32.mrf.mxu0
    %v421 = vadd.f32 %v198, %v420
    %v422 = vpop.f32.mrf.mxu0
    %v423 = vadd.f32 %v202, %v422
    %v424 = vpop.f32.mrf.mxu0
    %v425 = vadd.f32 %v198, %v424
    %v426 = vpop.f32.mrf.mxu0
    %v427 = vadd.f32 %v202, %v426
    %428 = vdwg.mxu0
    %429 = vmatprep.subr.bf16.mxu0 0
    %430 = vmatpush1.bf16.msra.mxu0 %v333
    %431 = vmatprep.subr.bf16.mxu0 0
    %432 = vmatpush1.bf16.msra.mxu0 %v330
    %433 = vmatprep.subr.bf16.mxu0 0
    %434 = vmatpush1.bf16.msra.mxu0 %v327
    %435 = vmatprep.subr.bf16.mxu0 0
    %436 = vmatpush1.bf16.msra.mxu0 %v324
    %437 = vmatprep.subr.bf16.mxu0 0
    %438 = vmatpush1.bf16.msra.mxu0 %v321
    %439 = vmatprep.subr.bf16.mxu0 0
    %440 = vmatpush1.bf16.msra.mxu0 %v318
    %441 = vmatprep.subr.bf16.mxu0 0
    %442 = vmatpush1.bf16.msra.mxu0 %v315
    %443 = vmatprep.subr.bf16.mxu0 0
    %444 = vmatpush1.bf16.msra.mxu0 %v312
    %445 = vmatprep.subr.bf16.mxu0 0
    %446 = vmatpush2.bf16.msra.mxu0 0
    %447 = vmatprep.subr.bf16.mxu0 0
    %448 = vmatpush2.bf16.msra.mxu0 0
    %449 = vmatprep.subr.bf16.mxu0 0
    %450 = vmatpush2.bf16.msra.mxu0 0
    %451 = vmatprep.subr.bf16.mxu0 0
    %452 = vmatpush2.bf16.msra.mxu0 0
    %453 = vmatprep.subr.bf16.mxu0 0
    %454 = vmatpush2.bf16.msra.mxu0 0
    %455 = vmatprep.subr.bf16.mxu0 0
    %456 = vmatpush2.bf16.msra.mxu0 0
    %457 = vmatprep.subr.bf16.mxu0 0
    %458 = vmatpush2.bf16.msra.mxu0 %v339
    %459 = vmatprep.subr.bf16.mxu0 0
    %460 = vmatpush2.bf16.msra.mxu0 %v336
    %461 = vmatprep.mubr.bf16.mxu0 %v371
    %462 = vmatmul.mubr.bf16.gmra.mxu0 %v149
    %v463 = vpop.f32.mrf.mxu0
    %v464 = vadd.f32 %v206, %v463
    %v465 = vpop.f32.mrf.mxu0
    %v466 = vpop.f32.mrf.mxu0
    %v467 = vadd.f32 %v206, %v466
    %v468 = vpop.f32.mrf.mxu0
    %469 = vmatprep.mubr.bf16.mxu0 %v374
    %470 = vmatmul.mubr.bf16.gmra.mxu0 %v151
    %v471 = vpop.f32.mrf.mxu0
    %v472 = vadd.f32 %v206, %v471
    %v473 = vpop.f32.mrf.mxu0
    %v474 = vpop.f32.mrf.mxu0
    %v475 = vadd.f32 %v206, %v474
    %v476 = vpop.f32.mrf.mxu0
    %477 = vdwg.mxu0
    %v478 = vmax.f32 %v411, 0.0
    %v479 = vmax.f32 %v413, 0.0
    %v480 = vmax.f32 %v464, 0.0
    %v481 = vmax.f32 %v415, 0.0
    %v482 = vmax.f32 %v417, 0.0
    %v483 = vmax.f32 %v467, 0.0
    %v484 = vmax.f32 %v421, 0.0
    %v485 = vmax.f32 %v423, 0.0
    %v486 = vmax.f32 %v472, 0.0
    %v487 = vmax.f32 %v425, 0.0
    %v488 = vmax.f32 %v427, 0.0
    %v489 = vmax.f32 %v475, 0.0
    %v490 = vadd.s32 %v53, 8
    %v491 = vadd.s32 %v53, 16
    %v492 = vadd.s32 %v53, 24
    %vm493 = vcmp.lt.s32.totalorder %v53, 0
    %v494 = vsub.s32 0, %v53
    %v495 = vsel %vm493, %v494, %v53
    %v496 = vshrl.u32 %v495, 4
    %v497 = vand.u32 %v495, 15
    %v498 = vsub.s32 0, %v497
    %v499 = vsel %vm493, %v498, %v497
    %vm500 = vcmp.lt.s32.totalorder %v490, 0
    %v501 = vsub.s32 0, %v490
    %v502 = vsel %vm500, %v501, %v490
    %v503 = vshrl.u32 %v502, 4
    %v504 = vand.u32 %v502, 15
    %v505 = vsub.s32 0, %v504
    %v506 = vsel %vm500, %v505, %v504
    %vm507 = vcmp.lt.s32.totalorder %v491, 0
    %v508 = vsub.s32 0, %v491
    %v509 = vsel %vm507, %v508, %v491
    %v510 = vshrl.u32 %v509, 4
    %v511 = vand.u32 %v509, 15
    %v512 = vsub.s32 0, %v511
    %v513 = vsel %vm507, %v512, %v511
    %vm514 = vcmp.lt.s32.totalorder %v492, 0
    %v515 = vsub.s32 0, %v492
    %v516 = vsel %vm514, %v515, %v492
    %v517 = vshrl.u32 %v516, 4
    %v518 = vand.u32 %v516, 15
    %v519 = vsub.s32 0, %v518
    %v520 = vsel %vm514, %v519, %v518
    %vm521 = vcmp.ne.s32.totalorder %v499, 0
    %vm522 = vcmp.ne.s32.totalorder %v506, 0
    %vm523 = vcmp.ne.s32.totalorder %v513, 0
    %vm524 = vcmp.ne.s32.totalorder %v520, 0
    %vm525 = vcmp.lt.s32.totalorder %v499, 0
    %vm526 = vcmp.lt.s32.totalorder %v506, 0
    %vm527 = vcmp.lt.s32.totalorder %v513, 0
    %vm528 = vcmp.lt.s32.totalorder %v520, 0
    %vm529 = vmand %vm525, %vm521
    %vm530 = vmand %vm526, %vm522
    %vm531 = vmand %vm527, %vm523
    %vm532 = vmand %vm528, %vm524
    %v533 = vadd.s32 %v499, 16
    %v534 = vadd.s32 %v506, 16
    %v535 = vadd.s32 %v513, 16
    %v536 = vadd.s32 %v520, 16
    %v537 = vsel %vm529, %v533, %v499
    %v538 = vsel %vm530, %v534, %v506
    %v539 = vsel %vm531, %v535, %v513
    %v540 = vsel %vm532, %v536, %v520
    %vm541 = vcmp.lt.s32.totalorder %v537, 14
    %vm542 = vcmp.lt.s32.totalorder %v538, 14
    %vm543 = vcmp.lt.s32.totalorder %v539, 14
    %vm544 = vcmp.lt.s32.totalorder %v540, 14
    %v545 = vsel %vm541, 1, 0
    %v546 = vsel %vm542, 1, 0
    %v547 = vsel %vm543, 1, 0
    %v548 = vsel %vm544, 1, 0
    %vm549 = vcmp.eq.s32.totalorder %v545, 1
    %vm550 = vcmp.eq.s32.totalorder %v546, 1
    %vm551 = vcmp.eq.s32.totalorder %v547, 1
    %vm552 = vcmp.eq.s32.totalorder %v548, 1
    %v553 = vsel %vm549, %v478, 0.0
    %v554 = vsel %vm550, %v481, 0.0
    %v555 = vsel %vm551, %v484, 0.0
    %v556 = vsel %vm552, %v487, 0.0
    %v557 = vmax.f32 %v553, %v554
    %v558 = vrot.slane %v557, 4
    %v559 = vmax.f32 %v557, %v558
    %v560 = vrot.slane %v559, 2
    %v561 = vmax.f32 %v559, %v560
    %v562 = vrot.slane %v561, 1
    %v563 = vmax.f32 %v561, %v562
    %v564 = vmax.f32 %v555, %v556
    %v565 = vrot.slane %v564, 4
    %v566 = vmax.f32 %v564, %v565
    %v567 = vrot.slane %v566, 2
    %v568 = vmax.f32 %v566, %v567
    %v569 = vrot.slane %v568, 1
    %v570 = vmax.f32 %v568, %v569
    %v574 = vunpack.c.l.s4 1983009808
    %v575 = vunpack.c.0.s8 %v574
    %v576 = vlaneseq
    %v577 = vshrl.u32 %v576, 7
    %v578 = vsub.s32 %v575, %v577
    %v579 = vrot.slane %v563, %v578
    %v581 = vunpack.c.l.s4 1983009808
    %v582 = vunpack.c.0.s8 %v581
    %v583 = vlaneseq
    %v584 = vshrl.u32 %v583, 7
    %v585 = vsub.s32 %v582, %v584
    %v586 = vrot.slane %v570, %v585
    %vm587 = vcmask 1044484
    %v588 = vsel %vm587, %v579, %v579
    %vm589 = vcmask 1046534
    %v590 = vsel %vm589, %v579, %v588
    %v591 = vrot.slane %v586, 7
    %vm592 = vcmask 1041409
    %v593 = vsel %vm592, %v591, %v590
    %vm594 = vcmask 1043459
    %v595 = vsel %vm594, %v591, %v593
    %vm596 = vcmask 1045509
    %v597 = vsel %vm596, %v591, %v595
    %vm598 = vcmask 1047559
    %v599 = vsel %vm598, %v591, %v597
    %601 = vst [vmem:[#allocation7] sm:$0x3] %v599
    %vm602 = vcmp.lt.s32.totalorder %v537, 13
    %vm603 = vcmp.lt.s32.totalorder %v538, 13
    %vm604 = vcmp.lt.s32.totalorder %v539, 13
    %vm605 = vcmp.lt.s32.totalorder %v540, 13
    %v606 = vsel %vm602, 1, 0
    %v607 = vsel %vm603, 1, 0
    %v608 = vsel %vm604, 1, 0
    %v609 = vsel %vm605, 1, 0
    %vm610 = vcmp.eq.s32.totalorder %v606, 1
    %vm611 = vcmp.eq.s32.totalorder %v607, 1
    %vm612 = vcmp.eq.s32.totalorder %v608, 1
    %vm613 = vcmp.eq.s32.totalorder %v609, 1
    %v614 = vsel %vm610, %v479, 0.0
    %v615 = vsel %vm611, %v482, 0.0
    %v616 = vsel %vm612, %v485, 0.0
    %v617 = vsel %vm613, %v488, 0.0
    %v618 = vmax.f32 %v614, %v615
    %v619 = vrot.slane %v618, 4
    %v620 = vmax.f32 %v618, %v619
    %v621 = vrot.slane %v620, 2
    %v622 = vmax.f32 %v620, %v621
    %v623 = vrot.slane %v622, 1
    %v624 = vmax.f32 %v622, %v623
    %v625 = vmax.f32 %v616, %v617
    %v626 = vrot.slane %v625, 4
    %v627 = vmax.f32 %v625, %v626
    %v628 = vrot.slane %v627, 2
    %v629 = vmax.f32 %v627, %v628
    %v630 = vrot.slane %v629, 1
    %v631 = vmax.f32 %v629, %v630
    %v635 = vunpack.c.l.s4 1983009808
    %v636 = vunpack.c.0.s8 %v635
    %v637 = vlaneseq
    %v638 = vshrl.u32 %v637, 7
    %v639 = vsub.s32 %v636, %v638
    %v640 = vrot.slane %v624, %v639
    %v642 = vunpack.c.l.s4 1983009808
    %v643 = vunpack.c.0.s8 %v642
    %v644 = vlaneseq
    %v645 = vshrl.u32 %v644, 7
    %v646 = vsub.s32 %v643, %v645
    %v647 = vrot.slane %v631, %v646
    %v648 = vsel %vm587, %v640, %v640
    %v649 = vsel %vm589, %v640, %v648
    %v650 = vrot.slane %v647, 7
    %v651 = vsel %vm592, %v650, %v649
    %v652 = vsel %vm594, %v650, %v651
    %v653 = vsel %vm596, %v650, %v652
    %v654 = vsel %vm598, %v650, %v653
    %656 = vst [vmem:[#allocation7 + $0x2] sm:$0x3] %v654
    %vm657 = vcmp.lt.s32.totalorder %v537, 12
    %vm658 = vcmp.lt.s32.totalorder %v538, 12
    %vm659 = vcmp.lt.s32.totalorder %v539, 12
    %vm660 = vcmp.lt.s32.totalorder %v540, 12
    %v661 = vsel %vm657, 1, 0
    %v662 = vsel %vm658, 1, 0
    %v663 = vsel %vm659, 1, 0
    %v664 = vsel %vm660, 1, 0
    %vm665 = vcmp.eq.s32.totalorder %v661, 1
    %vm666 = vcmp.eq.s32.totalorder %v662, 1
    %vm667 = vcmp.eq.s32.totalorder %v663, 1
    %vm668 = vcmp.eq.s32.totalorder %v664, 1
    %v669 = vsel %vm665, %v480, 0.0
    %v670 = vsel %vm666, %v483, 0.0
    %v671 = vsel %vm667, %v486, 0.0
    %v672 = vsel %vm668, %v489, 0.0
    %v673 = vmax.f32 %v669, %v670
    %v674 = vrot.slane %v673, 4
    %v675 = vmax.f32 %v673, %v674
    %v676 = vrot.slane %v675, 2
    %v677 = vmax.f32 %v675, %v676
    %v678 = vrot.slane %v677, 1
    %v679 = vmax.f32 %v677, %v678
    %v680 = vmax.f32 %v671, %v672
    %v681 = vrot.slane %v680, 4
    %v682 = vmax.f32 %v680, %v681
    %v683 = vrot.slane %v682, 2
    %v684 = vmax.f32 %v682, %v683
    %v685 = vrot.slane %v684, 1
    %v686 = vmax.f32 %v684, %v685
    %v690 = vunpack.c.l.s4 1983009808
    %v691 = vunpack.c.0.s8 %v690
    %v692 = vlaneseq
    %v693 = vshrl.u32 %v692, 7
    %v694 = vsub.s32 %v691, %v693
    %v695 = vrot.slane %v679, %v694
    %v697 = vunpack.c.l.s4 1983009808
    %v698 = vunpack.c.0.s8 %v697
    %v699 = vlaneseq
    %v700 = vshrl.u32 %v699, 7
    %v701 = vsub.s32 %v698, %v700
    %v702 = vrot.slane %v686, %v701
    %v703 = vsel %vm587, %v695, %v695
    %v704 = vsel %vm589, %v695, %v703
    %v705 = vrot.slane %v702, 7
    %v706 = vsel %vm592, %v705, %v704
    %v707 = vsel %vm594, %v705, %v706
    %v708 = vsel %vm596, %v705, %v707
    %v709 = vsel %vm598, %v705, %v708
    %711 = vst [vmem:[#allocation7 + $0x4] sm:$0x3] %v709
    // Predicated region
    $region22: #{tpu_custom_call.1} parent=1 // pred_check
      _
    $region23: #{tpu_custom_call.1} parent=1 // pred_check_branch
      %713 = sbr.rel (0) target = $region25
    $region24: #{tpu_custom_call.1} parent=1 // pred_region
      %s715 = ssub.s32 96, 96
      %716 = vsyncadd [#allocation4], %s715
      %s718 = sshll.u32 [#allocation7], 4
      %s719 = int_to_ptr.vmem [resolvable:$true] %s718
      %721 = dma.vmem_to_hbm [thread:$0]  %s719, 96, %s3, [#allocation4]
    $region25: #{tpu_custom_call.1} parent=1 // pred_fallthru
      _
    // Predicated region
    $region26: #{tpu_custom_call.1} parent=1 // pred_check
      _
    $region27: #{tpu_custom_call.1} parent=1 // pred_check_branch
      %723 = sbr.rel (0) target = $region29
    $region28: #{tpu_custom_call.1} parent=1 // pred_region
      %724 = dma.done [#allocation4], 96
    $region29: #{tpu_custom_call.1} parent=1 // pred_fallthru
      _
    %725 = vsyncpa [#allocation3], 1
    %726 = vsyncpa [#allocation6], 1
    %727 = vsyncpa [#allocation4], 1

</llo_original>
